<compile_context>
chip_gen: v7x
topology: tpu7x:2x2x1
jax: 0.10.0
libtpu: 0.0.40
codegen_flags: <defaults>
</compile_context>

<pallas_src>
import jax
import jax.numpy as jnp
from jax.experimental import pallas as pl
from jax.experimental.pallas import tpu as pltpu


def _pos_embed_kernel(col_ref, row_ref, out_ref):
    """One grid step fills TH image rows.

    col_ref: (W, D)        full col_embed table (same block every step)
    row_ref: (TH, D)       row_embed rows for this tile of image rows
    out_ref: (TH, W*2*D)   lane-dense slab:
        out[h, w*2D     : w*2D + D ] = col_embed[w]
        out[h, w*2D + D : (w+1)*2D ] = row_embed[tile_base + h]
    """
    W, D = col_ref.shape
    TH = row_ref.shape[0]
    col = col_ref[...]                                   # (W, D), loaded once
    row = row_ref[...]                                   # (TH, D), loaded once
    for w in range(W):                                   # static unroll, W is small
        base = w * 2 * D
        # Splat col_embed[w] across the TH sublanes (static row slice + splat).
        col_w = jnp.broadcast_to(col[w:w + 1, :], (TH, D))
        out_ref[:, base:base + D] = col_w                # col half (static lane slice)
        out_ref[:, base + D:base + 2 * D] = row          # row half (static lane slice)


def position_embedding_learned(tensor, row_embed, col_embed, *, rows_per_step=None):
    """tensor: NCHW input (values unused by the forward, as in PyTorch).
    row_embed: (H, D) float32, col_embed: (W, D) float32.
    Returns pos: (H*W, 2*D) float32."""
    del tensor  # values unused, matches PyTorch forward
    H, D = row_embed.shape
    W, Dc = col_embed.shape
    assert D == Dc

    lanes = W * 2 * D
    if rows_per_step is None:
        # Whole image in one step when the output slab is small; otherwise tile
        # the image rows in multiples of 8 sublanes, keeping each slab a few
        # MiB (fits v7x's smaller 64 MiB VMEM with double-buffering).
        slab_bytes = H * lanes * 4
        max_tile_bytes = 4 * 1024 * 1024
        if slab_bytes <= max_tile_bytes:
            rows_per_step = H
        else:
            rows_per_step = max(8, (max_tile_bytes // (lanes * 4)) // 8 * 8)
            while H % rows_per_step != 0:
                rows_per_step -= 8
            rows_per_step = max(rows_per_step, 8)
    TH = rows_per_step
    assert H % TH == 0, "rows_per_step must divide H"
    num_tiles = H // TH

    out2d = pl.pallas_call(
        _pos_embed_kernel,
        out_shape=jax.ShapeDtypeStruct((H, lanes), jnp.float32),
        grid=(num_tiles,),
        in_specs=[
            pl.BlockSpec((W, D), lambda i: (0, 0)),    # full col table each step
            pl.BlockSpec((TH, D), lambda i: (i, 0)),   # this tile's row embeddings
        ],
        out_specs=pl.BlockSpec((TH, lanes), lambda i: (i, 0)),
        compiler_params=pltpu.CompilerParams(
            dimension_semantics=("parallel",)),
    )(col_embed, row_embed)

    # Free row-major reshape: (H, W*2D) -> (H*W, 2D).
    return out2d.reshape(H * W, 2 * D)


if __name__ == "__main__":
    key = jax.random.PRNGKey(0)
    k_row, k_col, k_x = jax.random.split(key, 3)

    # Small shapes consistent with the module: feature_size=(H, W)=(8, 8), D=32.
    H, W, D = 8, 8, 32
    B, C = 2, 4

    # Deterministic "learned" parameters: uniform[0,1) like nn.init.uniform_.
    row_embed = jax.random.uniform(k_row, (H, D), dtype=jnp.float32)
    col_embed = jax.random.uniform(k_col, (W, D), dtype=jnp.float32)

    # NCHW input tensor (values unused by the forward, as in PyTorch).
    x = jax.random.normal(k_x, (B, C, H, W), dtype=jnp.float32)

    pos = position_embedding_learned(x, row_embed, col_embed)
    pos = jax.block_until_ready(pos)

    # Reference check (plain JAX, mirrors the torch cat/flatten semantics).
    ref = jnp.concatenate(
        [jnp.broadcast_to(col_embed[None, :, :], (H, W, D)),
         jnp.broadcast_to(row_embed[:, None, :], (H, W, D))],
        axis=-1).reshape(H * W, 2 * D)
    assert pos.shape == (H * W, 2 * D)
    assert jnp.allclose(pos, ref), "mismatch vs reference"

    print("KERNEL_OK")
</pallas_src>

<mosaic_0001>
module attributes {stable_mosaic.version = 11 : i64} {
  func.func @_pos_embed_kernel(%arg0: i32, %arg1: memref<8x32xf32, #tpu.memory_space<vmem>>, %arg2: memref<8x32xf32, #tpu.memory_space<vmem>>, %arg3: memref<8x512xf32, #tpu.memory_space<vmem>>) attributes {dimension_semantics = [#tpu.dimension_semantics<parallel>], iteration_bounds = array<i64: 1>, scalar_prefetch = 0 : i64, scratch_operands = 0 : i64, tpu.core_type = #tpu.core_type<tc>, window_params = [{pipeline_mode = #tpu.pipeline_mode<synchronous>, transform_indices = @transform_0, window_bounds = array<i64: 8, 32>}, {transform_indices = @transform_1, window_bounds = array<i64: 8, 32>}, {transform_indices = @transform_2, window_bounds = array<i64: 8, 512>}]} {
    %c0 = arith.constant 0 : index
    %c0_0 = arith.constant 0 : index
    %0 = vector.load %arg1[%c0, %c0_0] : memref<8x32xf32, #tpu.memory_space<vmem>>, vector<8x32xf32>
    %c0_1 = arith.constant 0 : index
    %c0_2 = arith.constant 0 : index
    %1 = vector.load %arg2[%c0_1, %c0_2] : memref<8x32xf32, #tpu.memory_space<vmem>>, vector<8x32xf32>
    %2 = vector.extract_strided_slice %0 {offsets = [0, 0], sizes = [1, 32], strides = [1, 1]} : vector<8x32xf32> to vector<1x32xf32>
    %3 = vector.shape_cast %2 : vector<1x32xf32> to vector<1x32xf32>
    %4 = vector.broadcast %3 : vector<1x32xf32> to vector<8x32xf32>
    %c0_3 = arith.constant 0 : index
    %c0_4 = arith.constant 0 : index
    %5 = vector.load %arg3[%c0_3, %c0_4] : memref<8x512xf32, #tpu.memory_space<vmem>>, vector<8x32xf32>
    tpu.vector_store %arg3[%c0_3, %c0_4], %4 {strides = array<i32>} : memref<8x512xf32, #tpu.memory_space<vmem>>, vector<8x32xf32>,
    %c0_5 = arith.constant 0 : index
    %c32 = arith.constant 32 : index
    %6 = vector.load %arg3[%c0_5, %c32] : memref<8x512xf32, #tpu.memory_space<vmem>>, vector<8x32xf32>
    tpu.vector_store %arg3[%c0_5, %c32], %1 {strides = array<i32>} : memref<8x512xf32, #tpu.memory_space<vmem>>, vector<8x32xf32>,
    %7 = vector.extract_strided_slice %0 {offsets = [1, 0], sizes = [1, 32], strides = [1, 1]} : vector<8x32xf32> to vector<1x32xf32>
    %8 = vector.shape_cast %7 : vector<1x32xf32> to vector<1x32xf32>
    %9 = vector.broadcast %8 : vector<1x32xf32> to vector<8x32xf32>
    %c0_6 = arith.constant 0 : index
    %c64 = arith.constant 64 : index
    %10 = vector.load %arg3[%c0_6, %c64] : memref<8x512xf32, #tpu.memory_space<vmem>>, vector<8x32xf32>
    tpu.vector_store %arg3[%c0_6, %c64], %9 {strides = array<i32>} : memref<8x512xf32, #tpu.memory_space<vmem>>, vector<8x32xf32>,
    %c0_7 = arith.constant 0 : index
    %c96 = arith.constant 96 : index
    %11 = vector.load %arg3[%c0_7, %c96] : memref<8x512xf32, #tpu.memory_space<vmem>>, vector<8x32xf32>
    tpu.vector_store %arg3[%c0_7, %c96], %1 {strides = array<i32>} : memref<8x512xf32, #tpu.memory_space<vmem>>, vector<8x32xf32>,
    %12 = vector.extract_strided_slice %0 {offsets = [2, 0], sizes = [1, 32], strides = [1, 1]} : vector<8x32xf32> to vector<1x32xf32>
    %13 = vector.shape_cast %12 : vector<1x32xf32> to vector<1x32xf32>
    %14 = vector.broadcast %13 : vector<1x32xf32> to vector<8x32xf32>
    %c0_8 = arith.constant 0 : index
    %c128 = arith.constant 128 : index
    %15 = vector.load %arg3[%c0_8, %c128] : memref<8x512xf32, #tpu.memory_space<vmem>>, vector<8x32xf32>
    tpu.vector_store %arg3[%c0_8, %c128], %14 {strides = array<i32>} : memref<8x512xf32, #tpu.memory_space<vmem>>, vector<8x32xf32>,
    %c0_9 = arith.constant 0 : index
    %c160 = arith.constant 160 : index
    %16 = vector.load %arg3[%c0_9, %c160] : memref<8x512xf32, #tpu.memory_space<vmem>>, vector<8x32xf32>
    tpu.vector_store %arg3[%c0_9, %c160], %1 {strides = array<i32>} : memref<8x512xf32, #tpu.memory_space<vmem>>, vector<8x32xf32>,
    %17 = vector.extract_strided_slice %0 {offsets = [3, 0], sizes = [1, 32], strides = [1, 1]} : vector<8x32xf32> to vector<1x32xf32>
    %18 = vector.shape_cast %17 : vector<1x32xf32> to vector<1x32xf32>
    %19 = vector.broadcast %18 : vector<1x32xf32> to vector<8x32xf32>
    %c0_10 = arith.constant 0 : index
    %c192 = arith.constant 192 : index
    %20 = vector.load %arg3[%c0_10, %c192] : memref<8x512xf32, #tpu.memory_space<vmem>>, vector<8x32xf32>
    tpu.vector_store %arg3[%c0_10, %c192], %19 {strides = array<i32>} : memref<8x512xf32, #tpu.memory_space<vmem>>, vector<8x32xf32>,
    %c0_11 = arith.constant 0 : index
    %c224 = arith.constant 224 : index
    %21 = vector.load %arg3[%c0_11, %c224] : memref<8x512xf32, #tpu.memory_space<vmem>>, vector<8x32xf32>
    tpu.vector_store %arg3[%c0_11, %c224], %1 {strides = array<i32>} : memref<8x512xf32, #tpu.memory_space<vmem>>, vector<8x32xf32>,
    %22 = vector.extract_strided_slice %0 {offsets = [4, 0], sizes = [1, 32], strides = [1, 1]} : vector<8x32xf32> to vector<1x32xf32>
    %23 = vector.shape_cast %22 : vector<1x32xf32> to vector<1x32xf32>
    %24 = vector.broadcast %23 : vector<1x32xf32> to vector<8x32xf32>
    %c0_12 = arith.constant 0 : index
    %c256 = arith.constant 256 : index
    %25 = vector.load %arg3[%c0_12, %c256] : memref<8x512xf32, #tpu.memory_space<vmem>>, vector<8x32xf32>
    tpu.vector_store %arg3[%c0_12, %c256], %24 {strides = array<i32>} : memref<8x512xf32, #tpu.memory_space<vmem>>, vector<8x32xf32>,
    %c0_13 = arith.constant 0 : index
    %c288 = arith.constant 288 : index
    %26 = vector.load %arg3[%c0_13, %c288] : memref<8x512xf32, #tpu.memory_space<vmem>>, vector<8x32xf32>
    tpu.vector_store %arg3[%c0_13, %c288], %1 {strides = array<i32>} : memref<8x512xf32, #tpu.memory_space<vmem>>, vector<8x32xf32>,
    %27 = vector.extract_strided_slice %0 {offsets = [5, 0], sizes = [1, 32], strides = [1, 1]} : vector<8x32xf32> to vector<1x32xf32>
    %28 = vector.shape_cast %27 : vector<1x32xf32> to vector<1x32xf32>
    %29 = vector.broadcast %28 : vector<1x32xf32> to vector<8x32xf32>
    %c0_14 = arith.constant 0 : index
    %c320 = arith.constant 320 : index
    %30 = vector.load %arg3[%c0_14, %c320] : memref<8x512xf32, #tpu.memory_space<vmem>>, vector<8x32xf32>
    tpu.vector_store %arg3[%c0_14, %c320], %29 {strides = array<i32>} : memref<8x512xf32, #tpu.memory_space<vmem>>, vector<8x32xf32>,
    %c0_15 = arith.constant 0 : index
    %c352 = arith.constant 352 : index
    %31 = vector.load %arg3[%c0_15, %c352] : memref<8x512xf32, #tpu.memory_space<vmem>>, vector<8x32xf32>
    tpu.vector_store %arg3[%c0_15, %c352], %1 {strides = array<i32>} : memref<8x512xf32, #tpu.memory_space<vmem>>, vector<8x32xf32>,
    %32 = vector.extract_strided_slice %0 {offsets = [6, 0], sizes = [1, 32], strides = [1, 1]} : vector<8x32xf32> to vector<1x32xf32>
    %33 = vector.shape_cast %32 : vector<1x32xf32> to vector<1x32xf32>
    %34 = vector.broadcast %33 : vector<1x32xf32> to vector<8x32xf32>
    %c0_16 = arith.constant 0 : index
    %c384 = arith.constant 384 : index
    %35 = vector.load %arg3[%c0_16, %c384] : memref<8x512xf32, #tpu.memory_space<vmem>>, vector<8x32xf32>
    tpu.vector_store %arg3[%c0_16, %c384], %34 {strides = array<i32>} : memref<8x512xf32, #tpu.memory_space<vmem>>, vector<8x32xf32>,
    %c0_17 = arith.constant 0 : index
    %c416 = arith.constant 416 : index
    %36 = vector.load %arg3[%c0_17, %c416] : memref<8x512xf32, #tpu.memory_space<vmem>>, vector<8x32xf32>
    tpu.vector_store %arg3[%c0_17, %c416], %1 {strides = array<i32>} : memref<8x512xf32, #tpu.memory_space<vmem>>, vector<8x32xf32>,
    %37 = vector.extract_strided_slice %0 {offsets = [7, 0], sizes = [1, 32], strides = [1, 1]} : vector<8x32xf32> to vector<1x32xf32>
    %38 = vector.shape_cast %37 : vector<1x32xf32> to vector<1x32xf32>
    %39 = vector.broadcast %38 : vector<1x32xf32> to vector<8x32xf32>
    %c0_18 = arith.constant 0 : index
    %c448 = arith.constant 448 : index
    %40 = vector.load %arg3[%c0_18, %c448] : memref<8x512xf32, #tpu.memory_space<vmem>>, vector<8x32xf32>
    tpu.vector_store %arg3[%c0_18, %c448], %39 {strides = array<i32>} : memref<8x512xf32, #tpu.memory_space<vmem>>, vector<8x32xf32>,
    %c0_19 = arith.constant 0 : index
    %c480 = arith.constant 480 : index
    %41 = vector.load %arg3[%c0_19, %c480] : memref<8x512xf32, #tpu.memory_space<vmem>>, vector<8x32xf32>
    tpu.vector_store %arg3[%c0_19, %c480], %1 {strides = array<i32>} : memref<8x512xf32, #tpu.memory_space<vmem>>, vector<8x32xf32>,
    return
  }
  func.func @transform_0(%arg0: i32) -> (i32, i32) {
    %c0_i32 = arith.constant 0 : i32
    %c0_i32_0 = arith.constant 0 : i32
    %c0_i32_1 = arith.constant 0 : i32
    return %c0_i32, %c0_i32_0 : i32, i32
  }
  func.func @transform_1(%arg0: i32) -> (i32, i32) {
    %c0_i32 = arith.constant 0 : i32
    %c0_i32_0 = arith.constant 0 : i32
    return %arg0, %c0_i32 : i32, i32
  }
  func.func @transform_2(%arg0: i32) -> (i32, i32) {
    %c0_i32 = arith.constant 0 : i32
    %c0_i32_0 = arith.constant 0 : i32
    return %arg0, %c0_i32 : i32, i32
  }
}

</mosaic_0001>

<llo_original>
// kernel: tpu_custom_call.1
$region0: #{tpu_custom_call.1}
  #allocation0 [shape = 'u32[]', space=smem, size = 0x4, offset = 0x4, fixed_abs, tag = 'smem constant byte address 0x4 - core index']
  #allocation1 [shape = 'u32[144,128]{1,0:T(1,128)}', space=vmem, size = 0x12000, scoped, tag = 'internal scratch']
  %s0 = inlined_call_operand.hbm [shape: f32[8,32], index: 0, kind: input, shape index: {}]
  %s1 = inlined_call_operand.hbm [shape: f32[8,32], index: 1, kind: input, shape index: {}]
  %s2 = inlined_call_operand.hbm [shape: f32[8,512], index: 2, kind: output, shape index: {}]
  %s3 = sld [smem:[#allocation0]]
  $region26: #{tpu_custom_call.1} parent=0
    _
  %s5 = ssub.s32 1, %s3
  %s6 = scalar_select 0, %s5, %s3
  $region1: #{tpu_custom_call.1} parent=0
    #allocation2 [shape = 'u8[4096]{0}', space=vmem, size = 0x1000, scoped, tag = 'input window, operand 0, single buffered']
    #allocation3 [shape = 's32[1]{0}', space=sflag, size = 0x4, scoped, tag = 'scoped memory for tpu_custom_call.1']
    #allocation4 [shape = 's32[1]{0}', space=sflag, size = 0x4, scoped, tag = 'scoped memory for tpu_custom_call.1']
    #allocation5 [shape = 'u8[4096]{0}', space=vmem, size = 0x1000, scoped, tag = 'input window, operand 1, single buffered']
    #allocation6 [shape = 's32[1]{0}', space=sflag, size = 0x4, scoped, tag = 'scoped memory for tpu_custom_call.1']
    #allocation7 [shape = 'u8[16384]{0}', space=vmem, size = 0x4000, scoped, tag = 'output window, operand 0, single buffered']
    %7 = vsyncpa [#allocation3], 0
    %8 = vsyncpa [#allocation6], 0
    %9 = vsyncpa [#allocation4], 0
    // Predicated region
    $region2: #{tpu_custom_call.1} parent=1 // pred_check
      _
    $region3: #{tpu_custom_call.1} parent=1 // pred_check_branch
      %11 = sbr.rel (0) target = $region5
    $region4: #{tpu_custom_call.1} parent=1 // pred_region
      %s13 = ssub.s32 128, 128
      %14 = vsyncadd [#allocation3], %s13
      %s16 = sshll.u32 [#allocation2], 4
      %s17 = int_to_ptr.vmem [resolvable:$true] %s16
      %19 = dma.hbm_to_vmem [thread:$0]  %s0, 128, %s17, [#allocation3]
    $region5: #{tpu_custom_call.1} parent=1 // pred_fallthru
      _
    // Predicated region
    $region6: #{tpu_custom_call.1} parent=1 // pred_check
      _
    $region7: #{tpu_custom_call.1} parent=1 // pred_check_branch
      %21 = sbr.rel (0) target = $region9
    $region8: #{tpu_custom_call.1} parent=1 // pred_region
      %s23 = ssub.s32 128, 128
      %24 = vsyncadd [#allocation6], %s23
      %s26 = sshll.u32 [#allocation5], 4
      %s27 = int_to_ptr.vmem [resolvable:$true] %s26
      %29 = dma.hbm_to_vmem [thread:$0]  %s1, 128, %s27, [#allocation6]
    $region9: #{tpu_custom_call.1} parent=1 // pred_fallthru
      _
    // Predicated region
    $region10: #{tpu_custom_call.1} parent=1 // pred_check
      _
    $region11: #{tpu_custom_call.1} parent=1 // pred_check_branch
      %31 = sbr.rel (0) target = $region13
    $region12: #{tpu_custom_call.1} parent=1 // pred_region
      %32 = dma.done [#allocation3], 128
    $region13: #{tpu_custom_call.1} parent=1 // pred_fallthru
      _
    // Predicated region
    $region14: #{tpu_custom_call.1} parent=1 // pred_check
      _
    $region15: #{tpu_custom_call.1} parent=1 // pred_check_branch
      %34 = sbr.rel (0) target = $region17
    $region16: #{tpu_custom_call.1} parent=1 // pred_region
      %35 = dma.done [#allocation6], 128
    $region17: #{tpu_custom_call.1} parent=1 // pred_fallthru
      _
    %v36 = vld [vmem:[#allocation2] sm:$0xff]
    %v37 = vld [vmem:[#allocation5] sm:$0xff]
    %v38 = vlaneseq
    %v39 = vshrl.u32 %v38, 7
    %v40 = vsub.s32 0, %v39
    %v41 = vrot.slane %v36, %v40
    %vm42 = vcmask 261120
    %43 = vst.msk [vmem:[#allocation7] sm:$0xff] %vm42, %v41
    %45 = vrot.lane.b32.xlu0 %v37, 32
    %v46 = vpop.permute.xlu0 %45
    %vm48 = vcmask 523520
    %49 = vst.msk [vmem:[#allocation7] sm:$0xff] %vm48, %v46
    %v50 = vlaneseq
    %v51 = vshrl.u32 %v50, 7
    %v52 = vsub.s32 1, %v51
    %v53 = vrot.slane %v36, %v52
    %55 = vrot.lane.b32.xlu0 %v53, 64
    %v56 = vpop.permute.xlu0 %55
    %vm58 = vcmask 785920
    %59 = vst.msk [vmem:[#allocation7] sm:$0xff] %vm58, %v56
    %60 = vrot.lane.b32.xlu0 %v37, 96
    %v61 = vpop.permute.xlu0 %60
    %vm63 = vcmask 1048320
    %64 = vst.msk [vmem:[#allocation7] sm:$0xff] %vm63, %v61
    %v65 = vlaneseq
    %v66 = vshrl.u32 %v65, 7
    %v67 = vsub.s32 2, %v66
    %v68 = vrot.slane %v36, %v67
    %69 = vst.msk [vmem:[#allocation7 + $0x8] sm:$0xff] %vm42, %v68
    %70 = vst.msk [vmem:[#allocation7 + $0x8] sm:$0xff] %vm48, %v46
    %v71 = vlaneseq
    %v72 = vshrl.u32 %v71, 7
    %v73 = vsub.s32 3, %v72
    %v74 = vrot.slane %v36, %v73
    %76 = vrot.lane.b32.xlu0 %v74, 64
    %v77 = vpop.permute.xlu0 %76
    %79 = vst.msk [vmem:[#allocation7 + $0x8] sm:$0xff] %vm58, %v77
    %80 = vst.msk [vmem:[#allocation7 + $0x8] sm:$0xff] %vm63, %v61
    %v81 = vlaneseq
    %v82 = vshrl.u32 %v81, 7
    %v83 = vsub.s32 4, %v82
    %v84 = vrot.slane %v36, %v83
    %85 = vst.msk [vmem:[#allocation7 + $0x10] sm:$0xff] %vm42, %v84
    %86 = vst.msk [vmem:[#allocation7 + $0x10] sm:$0xff] %vm48, %v46
    %v87 = vlaneseq
    %v88 = vshrl.u32 %v87, 7
    %v89 = vsub.s32 5, %v88
    %v90 = vrot.slane %v36, %v89
    %92 = vrot.lane.b32.xlu0 %v90, 64
    %v93 = vpop.permute.xlu0 %92
    %95 = vst.msk [vmem:[#allocation7 + $0x10] sm:$0xff] %vm58, %v93
    %96 = vst.msk [vmem:[#allocation7 + $0x10] sm:$0xff] %vm63, %v61
    %v97 = vlaneseq
    %v98 = vshrl.u32 %v97, 7
    %v99 = vsub.s32 6, %v98
    %v100 = vrot.slane %v36, %v99
    %101 = vst.msk [vmem:[#allocation7 + $0x18] sm:$0xff] %vm42, %v100
    %102 = vst.msk [vmem:[#allocation7 + $0x18] sm:$0xff] %vm48, %v46
    %v103 = vlaneseq
    %v104 = vshrl.u32 %v103, 7
    %v105 = vsub.s32 7, %v104
    %v106 = vrot.slane %v36, %v105
    %108 = vrot.lane.b32.xlu0 %v106, 64
    %v109 = vpop.permute.xlu0 %108
    %111 = vst.msk [vmem:[#allocation7 + $0x18] sm:$0xff] %vm58, %v109
    %112 = vst.msk [vmem:[#allocation7 + $0x18] sm:$0xff] %vm63, %v61
    // Predicated region
    $region18: #{tpu_custom_call.1} parent=1 // pred_check
      _
    $region19: #{tpu_custom_call.1} parent=1 // pred_check_branch
      %114 = sbr.rel (0) target = $region21
    $region20: #{tpu_custom_call.1} parent=1 // pred_region
      %s116 = ssub.s32 512, 512
      %117 = vsyncadd [#allocation4], %s116
      %s119 = sshll.u32 [#allocation7], 4
      %s120 = int_to_ptr.vmem [resolvable:$true] %s119
      %122 = dma.vmem_to_hbm [thread:$0]  %s120, 512, %s2, [#allocation4]
    $region21: #{tpu_custom_call.1} parent=1 // pred_fallthru
      _
    // Predicated region
    $region22: #{tpu_custom_call.1} parent=1 // pred_check
      _
    $region23: #{tpu_custom_call.1} parent=1 // pred_check_branch
      %124 = sbr.rel (0) target = $region25
    $region24: #{tpu_custom_call.1} parent=1 // pred_region
      %125 = dma.done [#allocation4], 512
    $region25: #{tpu_custom_call.1} parent=1 // pred_fallthru
      _
    %126 = vsyncpa [#allocation3], 1
    %127 = vsyncpa [#allocation6], 1
    %128 = vsyncpa [#allocation4], 1

</llo_original>
